<compile_context>
chip_gen: v5e
topology: v5e:2x2
jax: 0.10.0
libtpu: 0.0.40
codegen_flags: <defaults>
</compile_context>

<pallas_src>
import functools

import jax
import jax.numpy as jnp
from jax.experimental import pallas as pl
from jax.experimental.pallas import tpu as pltpu

_ALPHA = 0.25
_GAMMA = 2.0          # hard-coded as an explicit square inside the kernel
_LIVE_F32_TEMPS = 6   # conservative per-element live-temporary allowance for tile sizing


def _round_up(x: int, m: int) -> int:
    return ((x + m - 1) // m) * m


def _vmem_capacity_bytes() -> int:
    try:
        info = pltpu.get_tpu_info()
        cap = getattr(info, "vmem_capacity_bytes", None)
        if cap:
            return int(cap)
    except Exception:
        pass
    return 64 * 1024 * 1024  # conservative (v7x-sized) fallback


def _num_tensorcores_per_device() -> int:
    """Best-effort TensorCores-per-device detection (2 only on megacore parts)."""
    try:
        info = pltpu.get_tpu_info()
        for attr in ("num_cores", "core_count", "num_tensorcores"):
            v = getattr(info, attr, None)
            if v:
                return max(1, int(v))
    except Exception:
        pass
    try:
        dev = jax.devices()[0]
        v = getattr(dev, "num_cores", None)
        if v:
            return max(1, int(v))
        kind = str(getattr(dev, "device_kind", "")).lower()
        if any(s in kind for s in ("v4", "v5p", "v7", "7x")):
            return 2
    except Exception:
        pass
    return 1


# ----------------------------------- kernels -----------------------------------


def _focal_loss_kernel(inv_c, logits_ref, labels_ref, loss_ref):
    """Sigmoid focal loss over a lane-packed (tile, W) block (W = k*C lanes)."""
    @pl.when(pl.program_id(1) == 0)
    def _():
        loss_ref[...] = jnp.zeros_like(loss_ref)

    x = logits_ref[...].astype(jnp.float32)                 # (tm, W)
    lab = labels_ref[...].astype(jnp.int32)                 # (tm, W) folded labels, -1 = masked/pad
    _, w = x.shape

    lane = jax.lax.broadcasted_iota(jnp.int32, (1, w), 1)
    t = (lane == lab).astype(jnp.float32)                   # one-hot (all-zero for masked rows)
    valid = (lab >= 0).astype(jnp.float32)                  # per-lane validity

    # z = (1 - 2t) * x ;  BCE-with-logits(x, t) == softplus(z) ;  1 - p_t == sigmoid(z).
    z = x - 2.0 * (t * x)
    e = jnp.exp(-jnp.abs(z))                                # single exp per element (EUP)
    one_plus_e = 1.0 + e
    ce = jnp.maximum(z, 0.0) + jnp.log(one_plus_e)          # stable softplus(z)
    inv = pl.reciprocal(one_plus_e, approx=True)            # EUP vrcp slot, keeps VALU free
    q = jnp.where(z >= 0.0, inv, e * inv)                   # sigmoid(z) = 1 - p_t
    loss = ce * q * q                                       # (1 - p_t) ** 2 without pow
    alpha_t = _ALPHA * t + (1.0 - _ALPHA) * (1.0 - t)
    loss = alpha_t * loss

    # mean over classes then sum over valid rows == sum(valid * loss) / C.
    loss_ref[...] += jnp.sum(loss * valid) * inv_c


def _ce_loss_kernel(c, logits_ref, labels_ref, loss_ref):
    """Per-row (C-class) cross entropy over a lane-packed (tile, W) block.

    The segmented (per C-lane group) softmax sum is computed with an MXU matmul
    against a block-diagonal 0/1 matrix; the shared max is the packed-row max,
    which is exact for the per-group logsumexp unless rows packed into the same
    vreg row have logits differing by > ~100 (then the clamped log floors).
    """
    @pl.when(pl.program_id(1) == 0)
    def _():
        loss_ref[...] = jnp.zeros_like(loss_ref)

    x = logits_ref[...].astype(jnp.float32)                 # (tm, W)
    lab = labels_ref[...].astype(jnp.int32)
    _, w = x.shape

    lane = jax.lax.broadcasted_iota(jnp.int32, (1, w), 1)
    t = (lane == lab).astype(jnp.float32)
    valid = (lab >= 0).astype(jnp.float32)

    gi = jax.lax.broadcasted_iota(jnp.int32, (w, w), 0) // c
    gj = jax.lax.broadcasted_iota(jnp.int32, (w, w), 1) // c
    seg = (gi == gj).astype(jnp.float32)                    # (W, W) block-diagonal ones

    m = jnp.max(x, axis=-1, keepdims=True)                  # packed-row max (stability)
    ex = jnp.exp(x - m)
    sum_g = jnp.dot(ex, seg, preferred_element_type=jnp.float32)  # group sums, bcast per lane
    lse = m + jnp.log(jnp.maximum(sum_g, 1e-30))            # per-lane lse of its own group

    tgt_sum = jnp.sum(x * t)                                # sum over valid rows of x[label]
    lse_sum = jnp.sum(valid * lse) * (1.0 / c)              # each row counted C times
    loss_ref[...] += lse_sum - tgt_sum


# ------------------------------------ wrapper ------------------------------------


class IDCriterion:
    """JAX/Pallas port of models/motip/id_criterion.py::IDCriterion (forward only)."""

    def __init__(self, weight: float, use_focal_loss: bool):
        self.weight = weight                 # stored but (as in the PyTorch forward) not applied
        self.use_focal_loss = use_focal_loss

    def __call__(self, id_logits, id_labels, id_masks, *, tile_m=2048, num_splits=None):
        # Glue: drop the first time step, flatten rows.
        logits = id_logits[:, :, 1:, :, :]
        labels = id_labels[:, :, 1:, :]
        masks = id_masks[:, :, 1:, :]

        b, g, t, n, c = logits.shape
        m_rows = b * g * t * n
        if m_rows == 0:                      # T == 1 -> nothing to supervise
            return jnp.asarray(0.0, dtype=jnp.float32)

        # Valid-row count (single process: distributed_world_size() == 1), clamp >= 1.
        num_ids = jnp.maximum(jnp.sum(jnp.logical_not(masks)).astype(jnp.float32), 1.0)

        # ---- lane packing: k = 128 // C original rows per 128-lane vreg row. ----
        k = max(1, 128 // c)
        w = k * c

        # ---- 2-way TensorCore split only when the device really has 2 TCs (v7x). ----
        if num_splits is None:
            num_splits = _num_tensorcores_per_device()
        num_splits = max(1, min(int(num_splits), 2))

        m_packed = pl.cdiv(m_rows, k)

        # ---- generation-aware VMEM budget / scoped limit. ----
        vmem_cap = _vmem_capacity_bytes()
        vmem_limit = min(vmem_cap // 2, 64 * 1024 * 1024)   # 32 MiB on v7x, 64 MiB v5e/v6e
        buf_budget = vmem_limit // 2                         # headroom for output / fused temps

        lab_dtype = jnp.int8 if w <= 128 else jnp.int32
        lane_pad = _round_up(w, 128)
        row_bytes = (2 * lane_pad * (logits.dtype.itemsize + jnp.dtype(lab_dtype).itemsize)
                     + _LIVE_F32_TEMPS * lane_pad * 4)
        max_tile = max(32, buf_budget // row_bytes)
        tile = max(32, (min(int(tile_m), max_tile) // 32) * 32)
        tile = min(tile, _round_up(pl.cdiv(m_packed, num_splits), 32))

        blocks_per_split = pl.cdiv(m_packed, num_splits * tile)
        m_pad_packed = num_splits * blocks_per_split * tile
        m_pad = m_pad_packed * k

        # ---- packed logits slab (model dtype in HBM; f32 cast happens in-kernel)
        #      and the lane-dense folded-label side channel. ----
        logits2 = logits.reshape(m_rows, c)
        labels1 = jnp.where(masks, -1, labels).reshape(m_rows).astype(jnp.int32)
        if m_pad != m_rows:
            pad = m_pad - m_rows
            logits2 = jnp.pad(logits2, ((0, pad), (0, 0)))
            labels1 = jnp.pad(labels1, ((0, pad),), constant_values=-1)
        logits_packed = logits2.reshape(m_pad_packed, w)
        lab_k = labels1.reshape(m_pad_packed, k)
        group_off = (jnp.arange(k, dtype=jnp.int32) * c)[None, :]
        lab_fold = jnp.where(lab_k >= 0, lab_k + group_off, -1)        # -1 stays invalid
        labels_lane = jnp.repeat(lab_fold, c, axis=1).astype(lab_dtype)  # (m_pad_packed, W)

        if self.use_focal_loss:
            kernel = functools.partial(_focal_loss_kernel, 1.0 / c)
        else:
            kernel = functools.partial(_ce_loss_kernel, c)

        def row_map(s, i):
            return (s * blocks_per_split + i, 0)

        partial_sums = pl.pallas_call(
            kernel,
            out_shape=jax.ShapeDtypeStruct((num_splits, 1, 128), jnp.float32),
            grid_spec=pltpu.PrefetchScalarGridSpec(
                num_scalar_prefetch=0,
                grid=(num_splits, blocks_per_split),
                in_specs=[
                    pl.BlockSpec((tile, w), row_map),
                    pl.BlockSpec((tile, w), row_map),
                ],
                out_specs=pl.BlockSpec((1, 1, 128), lambda s, i: (s, 0, 0)),
            ),
            compiler_params=pltpu.CompilerParams(
                dimension_semantics=("parallel", "arbitrary"),
                vmem_limit_bytes=int(vmem_limit),
                allow_input_fusion=[True, True],
            ),
        )(logits_packed, labels_lane)

        loss_sum = jnp.sum(partial_sums[:, 0, 0])
        return loss_sum / num_ids


# ---------------------------- plain-JAX reference ----------------------------


def _reference(id_logits, id_labels, id_masks, use_focal_loss):
    logits = id_logits[:, :, 1:, :, :]
    labels = id_labels[:, :, 1:, :]
    masks = id_masks[:, :, 1:, :]
    c = logits.shape[-1]
    x = logits.reshape(-1, c)
    y = labels.reshape(-1)
    keep = ~masks.reshape(-1)
    x = x[keep]
    y = y[keep]
    num_ids = max(float(x.shape[0]), 1.0)
    if use_focal_loss:
        t = jax.nn.one_hot(y, c, dtype=jnp.float32)
        prob = jax.nn.sigmoid(x)
        ce = jnp.maximum(x, 0.0) - x * t + jnp.log1p(jnp.exp(-jnp.abs(x)))
        p_t = prob * t + (1 - prob) * (1 - t)
        loss = ce * (1 - p_t) ** _GAMMA
        alpha_t = _ALPHA * t + (1 - _ALPHA) * (1 - t)
        loss = (alpha_t * loss).mean(axis=1).sum()
    else:
        logp = jax.nn.log_softmax(x, axis=-1)
        loss = (-jnp.take_along_axis(logp, y[:, None], axis=-1)[:, 0]).sum()
    return loss / num_ids


if __name__ == "__main__":
    key = jax.random.PRNGKey(0)
    k1, k2, k3 = jax.random.split(key, 3)

    B, G, T, N, C = 2, 2, 5, 8, 32
    id_logits = jax.random.normal(k1, (B, G, T, N, C), dtype=jnp.float32)
    id_labels = jax.random.randint(k2, (B, G, T, N), 0, C, dtype=jnp.int32)
    id_masks = jax.random.bernoulli(k3, 0.3, (B, G, T, N))

    ok = True
    for use_focal in (True, False):
        crit = IDCriterion(weight=1.0, use_focal_loss=use_focal)
        fn = jax.jit(crit.__call__)
        out = jax.block_until_ready(fn(id_logits, id_labels, id_masks))
        ref = _reference(id_logits, id_labels, id_masks, use_focal)
        rtol = 5e-3 if use_focal else 1e-4   # focal path uses approx vrcp for sigmoid
        if not jnp.allclose(out, ref, rtol=rtol, atol=1e-5):
            ok = False
            print("MISMATCH", use_focal, float(out), float(ref))

    if ok:
        print("KERNEL_OK")
</pallas_src>

<mosaic_0001>
module attributes {stable_mosaic.version = 11 : i64} {
  func.func @_focal_loss_kernel(%arg0: i32, %arg1: i32, %arg2: memref<32x128xf32, #tpu.memory_space<vmem>>, %arg3: memref<32x128xi8, #tpu.memory_space<vmem>>, %arg4: memref<1x1x128xf32, #tpu.memory_space<vmem>>) attributes {dimension_semantics = [#tpu.dimension_semantics<parallel>, #tpu.dimension_semantics<arbitrary>], iteration_bounds = array<i64: 1, 1>, scalar_prefetch = 0 : i64, scratch_operands = 0 : i64, tpu.core_type = #tpu.core_type<tc>, window_params = [{transform_indices = @transform_0, window_bounds = array<i64: 32, 128>}, {transform_indices = @transform_1, window_bounds = array<i64: 32, 128>}, {transform_indices = @transform_2, window_bounds = array<i64: 1, 1, 128>}]} {
    %c0_i32 = arith.constant 0 : i32
    %0 = arith.cmpi eq, %arg1, %c0_i32 : i32
    %1 = arith.extui %0 : i1 to i32
    %c0_i32_0 = arith.constant 0 : i32
    %2 = arith.cmpi ne, %1, %c0_i32_0 : i32
    scf.if %2 {
      %cst_20 = arith.constant 0.000000e+00 : f32
      %54 = vector.broadcast %cst_20 : f32 to vector<1x1x128xf32>
      %c0_21 = arith.constant 0 : index
      %c0_22 = arith.constant 0 : index
      %c0_23 = arith.constant 0 : index
      %55 = vector.load %arg4[%c0_21, %c0_22, %c0_23] : memref<1x1x128xf32, #tpu.memory_space<vmem>>, vector<1x1x128xf32>
      tpu.vector_store %arg4[%c0_21, %c0_22, %c0_23], %54 {strides = array<i32>} : memref<1x1x128xf32, #tpu.memory_space<vmem>>, vector<1x1x128xf32>,
    } else {
    }
    %c0 = arith.constant 0 : index
    %c0_1 = arith.constant 0 : index
    %3 = vector.load %arg2[%c0, %c0_1] : memref<32x128xf32, #tpu.memory_space<vmem>>, vector<32x128xf32>
    %c0_2 = arith.constant 0 : index
    %c0_3 = arith.constant 0 : index
    %4 = vector.load %arg3[%c0_2, %c0_3] : memref<32x128xi8, #tpu.memory_space<vmem>>, vector<32x128xi8>
    %5 = arith.extsi %4 : vector<32x128xi8> to vector<32x128xi32>
    %6 = tpu.iota {dimensions = array<i32: 1>} : vector<1x128xi32>
    %7 = vector.broadcast %6 : vector<1x128xi32> to vector<32x128xi32>
    %8 = arith.cmpi eq, %7, %5 : vector<32x128xi32>
    %9 = arith.extui %8 : vector<32x128xi1> to vector<32x128xi32>
    %10 = arith.sitofp %9 : vector<32x128xi32> to vector<32x128xf32>
    %c0_i32_4 = arith.constant 0 : i32
    %11 = vector.broadcast %c0_i32_4 : i32 to vector<32x128xi32>
    %12 = arith.cmpi sge, %5, %11 : vector<32x128xi32>
    %13 = arith.extui %12 : vector<32x128xi1> to vector<32x128xi32>
    %14 = arith.sitofp %13 : vector<32x128xi32> to vector<32x128xf32>
    %15 = arith.mulf %10, %3 : vector<32x128xf32>
    %cst = arith.constant 2.000000e+00 : f32
    %16 = vector.broadcast %cst : f32 to vector<32x128xf32>
    %17 = arith.mulf %16, %15 : vector<32x128xf32>
    %18 = arith.subf %3, %17 : vector<32x128xf32>
    %19 = math.absf %18 : vector<32x128xf32>
    %cst_5 = arith.constant 0.000000e+00 : f32
    %20 = vector.broadcast %cst_5 : f32 to vector<32x128xf32>
    %21 = arith.subf %20, %19 : vector<32x128xf32>
    %22 = math.exp %21 : vector<32x128xf32>
    %cst_6 = arith.constant 1.000000e+00 : f32
    %23 = vector.broadcast %cst_6 : f32 to vector<32x128xf32>
    %24 = arith.addf %23, %22 : vector<32x128xf32>
    %cst_7 = arith.constant 0.000000e+00 : f32
    %25 = vector.broadcast %cst_7 : f32 to vector<32x128xf32>
    %26 = arith.maximumf %18, %25 : vector<32x128xf32>
    %27 = math.log %24 : vector<32x128xf32>
    %28 = arith.addf %26, %27 : vector<32x128xf32>
    %29 = tpu.reciprocal %24 {approx = true} : vector<32x128xf32> -> vector<32x128xf32>
    %cst_8 = arith.constant 0.000000e+00 : f32
    %30 = vector.broadcast %cst_8 : f32 to vector<32x128xf32>
    %31 = arith.cmpf oge, %18, %30 : vector<32x128xf32>
    %32 = arith.mulf %22, %29 : vector<32x128xf32>
    %33 = arith.select %31, %29, %32 : vector<32x128xi1>, vector<32x128xf32>
    %34 = arith.mulf %28, %33 : vector<32x128xf32>
    %35 = arith.mulf %34, %33 : vector<32x128xf32>
    %cst_9 = arith.constant 2.500000e-01 : f32
    %36 = vector.broadcast %cst_9 : f32 to vector<32x128xf32>
    %37 = arith.mulf %36, %10 : vector<32x128xf32>
    %cst_10 = arith.constant 1.000000e+00 : f32
    %38 = vector.broadcast %cst_10 : f32 to vector<32x128xf32>
    %39 = arith.subf %38, %10 : vector<32x128xf32>
    %cst_11 = arith.constant 7.500000e-01 : f32
    %40 = vector.broadcast %cst_11 : f32 to vector<32x128xf32>
    %41 = arith.mulf %40, %39 : vector<32x128xf32>
    %42 = arith.addf %37, %41 : vector<32x128xf32>
    %43 = arith.mulf %42, %35 : vector<32x128xf32>
    %c0_12 = arith.constant 0 : index
    %c0_13 = arith.constant 0 : index
    %c0_14 = arith.constant 0 : index
    %44 = vector.load %arg4[%c0_12, %c0_13, %c0_14] : memref<1x1x128xf32, #tpu.memory_space<vmem>>, vector<1x1x128xf32>
    %45 = arith.mulf %43, %14 : vector<32x128xf32>
    %46 = vector.shape_cast %45 : vector<32x128xf32> to vector<1x32x128xf32>
    %cst_15 = arith.constant dense<0.000000e+00> : vector<1xf32>
    %47 = vector.multi_reduction <add>, %46, %cst_15 [1, 2] : vector<1x32x128xf32> to vector<1xf32>
    %48 = vector.shape_cast %47 : vector<1xf32> to vector<1x1x1xf32>
    %49 = vector.extract %48[0, 0, 0] : f32 from vector<1x1x1xf32>
    %cst_16 = arith.constant 3.125000e-02 : f32
    %50 = arith.mulf %49, %cst_16 : f32
    %51 = vector.broadcast %50 : f32 to vector<1x1x128xf32>
    %52 = arith.addf %44, %51 : vector<1x1x128xf32>
    %c0_17 = arith.constant 0 : index
    %c0_18 = arith.constant 0 : index
    %c0_19 = arith.constant 0 : index
    %53 = vector.load %arg4[%c0_17, %c0_18, %c0_19] : memref<1x1x128xf32, #tpu.memory_space<vmem>>, vector<1x1x128xf32>
    tpu.vector_store %arg4[%c0_17, %c0_18, %c0_19], %52 {strides = array<i32>} : memref<1x1x128xf32, #tpu.memory_space<vmem>>, vector<1x1x128xf32>,
    return
  }
  func.func @transform_0(%arg0: i32, %arg1: i32) -> (i32, i32) {
    %c1_i32 = arith.constant 1 : i32
    %0 = arith.muli %arg0, %c1_i32 : i32
    %1 = arith.addi %0, %arg1 : i32
    %c0_i32 = arith.constant 0 : i32
    %c0_i32_0 = arith.constant 0 : i32
    return %1, %c0_i32 : i32, i32
  }
  func.func @transform_1(%arg0: i32, %arg1: i32) -> (i32, i32) {
    %c1_i32 = arith.constant 1 : i32
    %0 = arith.muli %arg0, %c1_i32 : i32
    %1 = arith.addi %0, %arg1 : i32
    %c0_i32 = arith.constant 0 : i32
    %c0_i32_0 = arith.constant 0 : i32
    return %1, %c0_i32 : i32, i32
  }
  func.func @transform_2(%arg0: i32, %arg1: i32) -> (i32, i32, i32) {
    %c0_i32 = arith.constant 0 : i32
    %c0_i32_0 = arith.constant 0 : i32
    %c0_i32_1 = arith.constant 0 : i32
    return %arg0, %c0_i32, %c0_i32_0 : i32, i32, i32
  }
}

</mosaic_0001>

<llo_original>
// kernel: a_call__.1
$region0: #{a_call__.1}
  #allocation0 [shape = 'u32[]', space=smem, size = 0x4, offset = 0x4, fixed_abs, tag = 'smem constant byte address 0x4 - core index']
  #allocation1 [shape = 'u32[72,128]{1,0:T(1,128)}', space=vmem, size = 0x9000, scoped, tag = 'internal scratch']
  %s0 = inlined_call_operand.vmem [shape: f32[32,128], index: 0, kind: input, shape index: {}]
  %s1 = inlined_call_operand.vmem [shape: s8[32,128], index: 1, kind: input, shape index: {}]
  %s2 = inlined_call_operand.vmem [shape: f32[1,1,128], index: 2, kind: output, shape index: {}]
  %s3 = sld [smem:[#allocation0]]
  $region22: #{a_call__.1} parent=0
    _
  %s5 = ssub.s32 1, %s3
  %s6 = scalar_select 0, %s5, %s3
  // Predicated region
  $region2: #{a_call__.1} parent=0 // pred_check
    _
  $region3: #{a_call__.1} parent=0 // pred_check_branch
    %8 = sbr.rel (0) target = $region5
  $region4: #{a_call__.1} parent=0 // pred_region
    %s9 = sadd.s32 0, 0
    %s10 = smul.u32 4, %s9
    %p11 = scmp.lt.s32.totalorder %s10, 3
    %s12 = scalar_select %p11, %s10, 3
    %s13 = smul.addr %s12, 8
    %s14 = scalar_lea.vmem %s0, %s13
    %s15 = sadd.s32 0, 0
    %s16 = smul.u32 4, %s15
  $region5: #{a_call__.1} parent=0 // pred_fallthru
    _
  // Predicated region
  $region6: #{a_call__.1} parent=0 // pred_check
    _
  $region7: #{a_call__.1} parent=0 // pred_check_branch
    %18 = sbr.rel (0) target = $region9
  $region8: #{a_call__.1} parent=0 // pred_region
    %s19 = sadd.s32 0, 0
    %p20 = scmp.lt.s32.totalorder %s19, 0
    %s21 = scalar_select %p20, %s19, 0
    %s22 = smul.addr %s21, 8
    %s23 = scalar_lea.vmem %s1, %s22
    %s24 = sadd.s32 0, 0
  $region9: #{a_call__.1} parent=0 // pred_fallthru
    _
  %s25 = sadd.s32 0, 0
  %s26 = smul.u32 4, %s25
  %p27 = scmp.lt.s32.totalorder %s26, 3
  %s28 = scalar_select %p27, %s26, 3
  %s29 = smul.addr %s28, 8
  %s30 = scalar_lea.vmem %s0, %s29
  %s31 = sadd.s32 0, 0
  %p32 = scmp.lt.s32.totalorder %s31, 0
  %s33 = scalar_select %p32, %s31, 0
  %s34 = smul.addr %s33, 8
  %s35 = scalar_lea.vmem %s1, %s34
  %s36 = sadd.s32 0, 0
  %s37 = smul.u32 4, %s36
  %p38 = scmp.lt.s32.totalorder %s37, 3
  %s39 = scalar_select %p38, %s37, 3
  %s40 = smul.addr %s39, 8
  %s41 = scalar_lea.vmem %s0, %s40
  %s42 = sadd.s32 0, 0
  %s43 = smul.u32 4, %s42
  %s44 = sadd.s32 0, 0
  %p45 = scmp.lt.s32.totalorder %s44, 0
  %s46 = scalar_select %p45, %s44, 0
  %s47 = smul.addr %s46, 8
  %s48 = scalar_lea.vmem %s1, %s47
  %s49 = sadd.s32 0, 0
  %p50 = scmp.eq.s32.totalorder 0, 0
  // Predicated region
  $region10: #{a_call__.1} parent=0 // pred_check
    %p51 = pneg %p50
  $region11: #{a_call__.1} parent=0 // pred_check_branch
    %53 = sbr.rel (%p51) target = $region13
  $region12: #{a_call__.1} parent=0 // pred_region
    %54 = vst [vmem:[%s2] sm:$0x1] 0.0
  $region13: #{a_call__.1} parent=0 // pred_fallthru
    _
  %v55 = vld [vmem:[%s41] sm:$0xff]
  %v56 = vld [vmem:[%s41 + $0x8] sm:$0xff]
  %v57 = vld [vmem:[%s41 + $0x10] sm:$0xff]
  %v58 = vld [vmem:[%s41 + $0x18] sm:$0xff]
  %v59 = vld [vmem:[%s48] sm:$0xff]
  %v60 = vunpack.c.0.s8 %v59
  %v61 = vunpack.c.1.s8 %v59
  %v62 = vunpack.c.2.s8 %v59
  %v63 = vunpack.c.3.s8 %v59
  %v64 = vlaneseq
  %v65 = vand.u32 %v64, 127
  %vm66 = vcmp.eq.s32.totalorder %v65, %v60
  %vm67 = vcmp.eq.s32.totalorder %v65, %v61
  %vm68 = vcmp.eq.s32.totalorder %v65, %v62
  %vm69 = vcmp.eq.s32.totalorder %v65, %v63
  %v70 = vsel %vm66, 1, 0
  %v71 = vsel %vm67, 1, 0
  %v72 = vsel %vm68, 1, 0
  %v73 = vsel %vm69, 1, 0
  %v74 = vcvt.s32.f32 %v70
  %v75 = vcvt.s32.f32 %v71
  %v76 = vcvt.s32.f32 %v72
  %v77 = vcvt.s32.f32 %v73
  %vm78 = vcmp.ge.s32.totalorder %v60, 0
  %vm79 = vcmp.ge.s32.totalorder %v61, 0
  %vm80 = vcmp.ge.s32.totalorder %v62, 0
  %vm81 = vcmp.ge.s32.totalorder %v63, 0
  %v82 = vsel %vm78, 1, 0
  %v83 = vsel %vm79, 1, 0
  %v84 = vsel %vm80, 1, 0
  %v85 = vsel %vm81, 1, 0
  %v86 = vcvt.s32.f32 %v82
  %v87 = vcvt.s32.f32 %v83
  %v88 = vcvt.s32.f32 %v84
  %v89 = vcvt.s32.f32 %v85
  %v90 = vmul.f32 %v74, %v55
  %v91 = vmul.f32 %v75, %v56
  %v92 = vmul.f32 %v76, %v57
  %v93 = vmul.f32 %v77, %v58
  %v94 = vmul.f32 %v90, 2.0
  %v95 = vmul.f32 %v91, 2.0
  %v96 = vmul.f32 %v92, 2.0
  %v97 = vmul.f32 %v93, 2.0
  %v98 = vsub.f32 %v55, %v94
  %v99 = vsub.f32 %v56, %v95
  %v100 = vsub.f32 %v57, %v96
  %v101 = vsub.f32 %v58, %v97
  %v102 = vand.u32 2147483647, %v98
  %v103 = vand.u32 2147483647, %v99
  %v104 = vand.u32 2147483647, %v100
  %v105 = vand.u32 2147483647, %v101
  %v106 = vsub.f32 0.0, %v102
  %v107 = vsub.f32 0.0, %v103
  %v108 = vsub.f32 0.0, %v104
  %v109 = vsub.f32 0.0, %v105
  %v110 = vmul.f32 %v106, 1.442695
  %v111 = vpow.pop %v110
  %v112 = vmul.f32 %v107, 1.442695
  %v113 = vpow.pop %v112
  %v114 = vmul.f32 %v108, 1.442695
  %v115 = vpow.pop %v114
  %v116 = vmul.f32 %v109, 1.442695
  %v117 = vpow.pop %v116
  %v118 = vadd.f32 %v111, 1.0
  %v119 = vadd.f32 %v113, 1.0
  %v120 = vadd.f32 %v115, 1.0
  %v121 = vadd.f32 %v117, 1.0
  %v122 = vmax.f32 %v98, 0.0
  %v123 = vmax.f32 %v99, 0.0
  %v124 = vmax.f32 %v100, 0.0
  %v125 = vmax.f32 %v101, 0.0
  %v126 = vlog2.pop %v118
  %v127 = vmul.f32 %v126, 0.6931472
  %v128 = vlog2.pop %v119
  %v129 = vmul.f32 %v128, 0.6931472
  %v130 = vlog2.pop %v120
  %v131 = vmul.f32 %v130, 0.6931472
  %v132 = vlog2.pop %v121
  %v133 = vmul.f32 %v132, 0.6931472
  %v134 = vadd.f32 %v122, %v127
  %v135 = vadd.f32 %v123, %v129
  %v136 = vadd.f32 %v124, %v131
  %v137 = vadd.f32 %v125, %v133
  %v138 = vrcp.pop %v118
  %v139 = vrcp.pop %v119
  %v140 = vrcp.pop %v120
  %v141 = vrcp.pop %v121
  %vm142 = vcmp.ge.f32.partialorder %v98, 0.0
  %vm143 = vcmp.ge.f32.partialorder %v99, 0.0
  %vm144 = vcmp.ge.f32.partialorder %v100, 0.0
  %vm145 = vcmp.ge.f32.partialorder %v101, 0.0
  %v146 = vmul.f32 %v111, %v138
  %v147 = vmul.f32 %v113, %v139
  %v148 = vmul.f32 %v115, %v140
  %v149 = vmul.f32 %v117, %v141
  %v150 = vsel %vm142, %v138, %v146
  %v151 = vsel %vm143, %v139, %v147
  %v152 = vsel %vm144, %v140, %v148
  %v153 = vsel %vm145, %v141, %v149
  %v154 = vmul.f32 %v134, %v150
  %v155 = vmul.f32 %v135, %v151
  %v156 = vmul.f32 %v136, %v152
  %v157 = vmul.f32 %v137, %v153
  %v158 = vmul.f32 %v154, %v150
  %v159 = vmul.f32 %v155, %v151
  %v160 = vmul.f32 %v156, %v152
  %v161 = vmul.f32 %v157, %v153
  %v162 = vmul.f32 %v74, 0.25
  %v163 = vmul.f32 %v75, 0.25
  %v164 = vmul.f32 %v76, 0.25
  %v165 = vmul.f32 %v77, 0.25
  %v166 = vsub.f32 1.0, %v74
  %v167 = vsub.f32 1.0, %v75
  %v168 = vsub.f32 1.0, %v76
  %v169 = vsub.f32 1.0, %v77
  %v170 = vmul.f32 %v166, 0.75
  %v171 = vmul.f32 %v167, 0.75
  %v172 = vmul.f32 %v168, 0.75
  %v173 = vmul.f32 %v169, 0.75
  %v174 = vadd.f32 %v162, %v170
  %v175 = vadd.f32 %v163, %v171
  %v176 = vadd.f32 %v164, %v172
  %v177 = vadd.f32 %v165, %v173
  %v178 = vmul.f32 %v174, %v158
  %v179 = vmul.f32 %v175, %v159
  %v180 = vmul.f32 %v176, %v160
  %v181 = vmul.f32 %v177, %v161
  %v182 = vld [vmem:[%s2] sm:$0x1]
  %v183 = vmul.f32 %v178, %v86
  %v184 = vmul.f32 %v179, %v87
  %v185 = vmul.f32 %v180, %v88
  %v186 = vmul.f32 %v181, %v89
  %v187 = vadd.f32 %v183, %v184
  %v188 = vadd.f32 %v187, %v185
  %v189 = vadd.f32 %v188, %v186
  %190 = vadd.xlane.f32.xlu0 %v189
  %v191 = vpop.xlane.xlu0 %190
  %v192 = vrot.slane %v191, 4
  %v193 = vadd.f32 %v191, %v192
  %v194 = vrot.slane %v193, 2
  %v195 = vadd.f32 %v193, %v194
  %v196 = vrot.slane %v195, 1
  %v197 = vadd.f32 %v195, %v196
  %s198 = vtos %v197
  %s199 = smul.f32 %s198, 0.03125
  %v200 = vstv %s199
  %v201 = vadd.f32 %v182, %v200
  %202 = vst [vmem:[%s2] sm:$0x1] %v201
  // Predicated region
  $region14: #{a_call__.1} parent=0 // pred_check
    _
  $region15: #{a_call__.1} parent=0 // pred_check_branch
    %204 = sbr.rel (0) target = $region17
  $region16: #{a_call__.1} parent=0 // pred_region
    _
  $region17: #{a_call__.1} parent=0 // pred_fallthru
    _
  // Predicated region
  $region18: #{a_call__.1} parent=0 // pred_check
    _
  $region19: #{a_call__.1} parent=0 // pred_check_branch
    %206 = sbr.rel (0) target = $region21
  $region20: #{a_call__.1} parent=0 // pred_region
    _
  $region21: #{a_call__.1} parent=0 // pred_fallthru
    _

</llo_original>
